<compile_context>
chip_gen: v6e
topology: v6e:2x2x1
jax: 0.10.0
libtpu: 0.0.40
codegen_flags: <defaults>
</compile_context>

<pallas_src>
import numpy as np
import jax
import jax.numpy as jnp
from jax.experimental import pallas as pl
from jax.experimental.pallas import tpu as pltpu


# -----------------------------------------------------------------------------
# Parameter setup (plain numpy): sinusoid table, built once.
# -----------------------------------------------------------------------------
def make_sinusoid_table(n_position: int, d_hid: int) -> jnp.ndarray:
    """Deterministic sinusoid position encoding table, shape (1, n_position, d_hid)."""
    denominator = np.array(
        [1.0 / np.power(10000, 2 * (hid_j // 2) / d_hid) for hid_j in range(d_hid)],
        dtype=np.float32,
    ).reshape(1, -1)                                              # (1, d_hid)
    pos = np.arange(n_position, dtype=np.float32).reshape(-1, 1)  # (n_position, 1)
    table = pos * denominator                                     # (n_position, d_hid)
    table[:, 0::2] = np.sin(table[:, 0::2])
    table[:, 1::2] = np.cos(table[:, 1::2])
    return jnp.asarray(table[None, :, :], dtype=jnp.float32)      # (1, n_position, d_hid)


# -----------------------------------------------------------------------------
# Kernel body: elementwise add; table block broadcasts over the batch dim.
# -----------------------------------------------------------------------------
def _add_kernel(x_ref, t_ref, o_ref):
    o_ref[...] = (x_ref[...] + t_ref[...]).astype(o_ref.dtype)


# -----------------------------------------------------------------------------
# Per-generation VMEM budget (live double-buffered pipeline buffers) and the
# scoped-VMEM limit passed to the compiler.
# -----------------------------------------------------------------------------
def _vmem_budget():
    try:
        cap = int(pltpu.get_tpu_info().vmem_capacity_bytes)
    except Exception:
        cap = 64 * 1024 * 1024  # conservative fallback (v7x per-TC size)
    # ~3/8 of physical VMEM for live tiles, scoped limit at ~5/8 of physical.
    budget = max(12 * 1024 * 1024, min(48 * 1024 * 1024, (cap * 3) // 8))
    vmem_limit = int(min((cap * 5) // 8, 2 * budget))
    return budget, vmem_limit


def _row_tile(num_rows: int, bytes_per_tile_row: int, budget_bytes: int) -> int:
    """Largest row tile (multiple of 8, or full extent) fitting the budget."""
    ts = budget_bytes // max(bytes_per_tile_row, 1)
    if ts >= num_rows:
        return num_rows                    # single full-extent block (may be ragged)
    return max(8, (ts // 8) * 8)           # multiple of 8; partial trailing block OK


# -----------------------------------------------------------------------------
# Generic tiled broadcast-add over a (B, R, C) view.
#   x:     (B, R, C)
#   table: (1, n_rows >= R, C)   (row r of the table pairs with row r of x)
# -----------------------------------------------------------------------------
def _tiled_add(x: jnp.ndarray, table: jnp.ndarray) -> jnp.ndarray:
    B, R, C = x.shape
    itemsize = int(x.dtype.itemsize)
    budget, vmem_limit = _vmem_budget()

    fold_batch = B <= 8
    # Live bytes per tile row: x + out (+ table), each double-buffered.
    bytes_per_row = ((4 * B + 2) if fold_batch else 6) * C * itemsize
    ts = _row_tile(R, bytes_per_row, budget)
    num_s = pl.cdiv(R, ts)

    # A ragged full-extent tile (ts == R, ts % 8 != 0) forces the table block's
    # row dim to equal its full array dim -> slice the (tiny) table to R rows.
    # Otherwise window directly into the full table via the index_map.
    if ts % 8 != 0 and table.shape[1] != R:
        table = table[:, :R, :]

    cost = pl.CostEstimate(
        flops=B * R * C,
        transcendentals=0,
        bytes_accessed=(2 * B + 1) * R * C * itemsize,
    )

    if fold_batch:
        grid = (num_s,)
        in_specs = [
            pl.BlockSpec((B, ts, C), lambda s: (0, s, 0)),   # x
            pl.BlockSpec((1, ts, C), lambda s: (0, s, 0)),   # table (broadcast in-kernel)
        ]
        out_specs = pl.BlockSpec((B, ts, C), lambda s: (0, s, 0))
        dims = ("parallel",)
    else:
        grid = (num_s, B)   # batch innermost -> table block DMA'd once per s-tile
        in_specs = [
            pl.BlockSpec((1, ts, C), lambda s, b: (b, s, 0)),   # x
            pl.BlockSpec((1, ts, C), lambda s, b: (0, s, 0)),   # table (index unchanged over b)
        ]
        out_specs = pl.BlockSpec((1, ts, C), lambda s, b: (b, s, 0))
        dims = ("parallel", "arbitrary")

    return pl.pallas_call(
        _add_kernel,
        out_shape=jax.ShapeDtypeStruct((B, R, C), x.dtype),
        grid=grid,
        in_specs=in_specs,
        out_specs=out_specs,
        compiler_params=pltpu.CompilerParams(
            dimension_semantics=dims,
            vmem_limit_bytes=vmem_limit,
        ),
        cost_estimate=cost,
    )(x, table)


# -----------------------------------------------------------------------------
# Public entry point.
# -----------------------------------------------------------------------------
def positional_encoding(x: jnp.ndarray, table: jnp.ndarray) -> jnp.ndarray:
    """x: (B, S, D); table: (1, n_position, D).  Returns x + table[:, :S]."""
    B, S, D = x.shape
    n_position = table.shape[1]
    if S > n_position:
        raise ValueError(f"sequence length {S} exceeds table size {n_position}")

    table = table.astype(x.dtype)

    if D % 128 != 0 and (S * D) % 128 == 0:
        # Lane-dense path: reshape the (S, D) plane into rows of 128 lanes so
        # tiles are full (8,128) vregs instead of sublane-sparse strips.
        R = (S * D) // 128
        x_r = x.reshape(B, R, 128)
        t_r = table[:, :S, :].reshape(1, R, 128)
        out = _tiled_add(x_r, t_r)
        return out.reshape(B, S, D)

    # General path: D is a multiple of 128 (fast) or already-small shapes where
    # the block's last dim equals the full array dim (correct, layout-limited).
    return _tiled_add(x, table)


if __name__ == "__main__":
    key = jax.random.PRNGKey(0)
    n_position = 200

    # --- Module-consistent small shape (lane-dense path, D=32, folded batch). ---
    B, S, D = 2, 8, 32
    x = jax.random.normal(key, (B, S, D), dtype=jnp.float32)
    table = make_sinusoid_table(n_position, D)
    out = jax.block_until_ready(positional_encoding(x, table))
    ref = x + table[:, :S, :]
    assert out.shape == (B, S, D)
    np.testing.assert_allclose(np.asarray(out), np.asarray(ref), rtol=1e-6, atol=1e-6)

    # --- Tiled 3-D path, D multiple of 128, folded batch. ---
    B2, S2, D2 = 2, 16, 128
    x2 = jax.random.normal(jax.random.PRNGKey(1), (B2, S2, D2), dtype=jnp.float32)
    table2 = make_sinusoid_table(n_position, D2)
    out2 = jax.block_until_ready(positional_encoding(x2, table2))
    np.testing.assert_allclose(np.asarray(out2), np.asarray(x2 + table2[:, :S2, :]),
                               rtol=1e-6, atol=1e-6)

    # --- Large-batch path (batch on the grid, "arbitrary" innermost axis). ---
    B3, S3, D3 = 16, 24, 128
    x3 = jax.random.normal(jax.random.PRNGKey(2), (B3, S3, D3), dtype=jnp.float32)
    out3 = jax.block_until_ready(positional_encoding(x3, table2))
    np.testing.assert_allclose(np.asarray(out3), np.asarray(x3 + table2[:, :S3, :]),
                               rtol=1e-6, atol=1e-6)

    # --- Ragged S + bf16 path (partial/full-extent ragged block, dtype cast). ---
    B4, S4, D4 = 3, 7, 256
    x4 = jax.random.normal(jax.random.PRNGKey(3), (B4, S4, D4), dtype=jnp.bfloat16)
    table4 = make_sinusoid_table(n_position, D4)
    out4 = jax.block_until_ready(positional_encoding(x4, table4))
    ref4 = (x4 + table4[:, :S4, :].astype(jnp.bfloat16)).astype(jnp.bfloat16)
    np.testing.assert_allclose(np.asarray(out4, dtype=np.float32),
                               np.asarray(ref4, dtype=np.float32), rtol=1e-2, atol=1e-2)

    print("KERNEL_OK")
</pallas_src>

<mosaic_0001>
module attributes {stable_mosaic.version = 11 : i64} {
  func.func @_add_kernel(%arg0: i32, %arg1: memref<2x2x128xf32, #tpu.memory_space<vmem>>, %arg2: memref<1x2x128xf32, #tpu.memory_space<vmem>>, %arg3: memref<2x2x128xf32, #tpu.memory_space<vmem>>) attributes {dimension_semantics = [#tpu.dimension_semantics<parallel>], iteration_bounds = array<i64: 1>, scalar_prefetch = 0 : i64, scratch_operands = 0 : i64, tpu.core_type = #tpu.core_type<tc>, window_params = [{transform_indices = @transform_0, window_bounds = array<i64: 2, 2, 128>}, {transform_indices = @transform_1, window_bounds = array<i64: 1, 2, 128>}, {transform_indices = @transform_2, window_bounds = array<i64: 2, 2, 128>}]} {
    %c0 = arith.constant 0 : index
    %c0_0 = arith.constant 0 : index
    %c0_1 = arith.constant 0 : index
    %0 = vector.load %arg1[%c0, %c0_0, %c0_1] : memref<2x2x128xf32, #tpu.memory_space<vmem>>, vector<2x2x128xf32>
    %c0_2 = arith.constant 0 : index
    %c0_3 = arith.constant 0 : index
    %c0_4 = arith.constant 0 : index
    %1 = vector.load %arg2[%c0_2, %c0_3, %c0_4] : memref<1x2x128xf32, #tpu.memory_space<vmem>>, vector<1x2x128xf32>
    %2 = vector.broadcast %1 : vector<1x2x128xf32> to vector<2x2x128xf32>
    %3 = arith.addf %0, %2 : vector<2x2x128xf32>
    %c0_5 = arith.constant 0 : index
    %c0_6 = arith.constant 0 : index
    %c0_7 = arith.constant 0 : index
    %4 = vector.load %arg3[%c0_5, %c0_6, %c0_7] : memref<2x2x128xf32, #tpu.memory_space<vmem>>, vector<2x2x128xf32>
    tpu.vector_store %arg3[%c0_5, %c0_6, %c0_7], %3 {strides = array<i32>} : memref<2x2x128xf32, #tpu.memory_space<vmem>>, vector<2x2x128xf32>,
    return
  }
  func.func @transform_0(%arg0: i32) -> (i32, i32, i32) {
    %c0_i32 = arith.constant 0 : i32
    %c0_i32_0 = arith.constant 0 : i32
    %c0_i32_1 = arith.constant 0 : i32
    return %c0_i32, %arg0, %c0_i32_0 : i32, i32, i32
  }
  func.func @transform_1(%arg0: i32) -> (i32, i32, i32) {
    %c0_i32 = arith.constant 0 : i32
    %c0_i32_0 = arith.constant 0 : i32
    %c0_i32_1 = arith.constant 0 : i32
    return %c0_i32, %arg0, %c0_i32_0 : i32, i32, i32
  }
  func.func @transform_2(%arg0: i32) -> (i32, i32, i32) {
    %c0_i32 = arith.constant 0 : i32
    %c0_i32_0 = arith.constant 0 : i32
    %c0_i32_1 = arith.constant 0 : i32
    return %c0_i32, %arg0, %c0_i32_0 : i32, i32, i32
  }
}

</mosaic_0001>

<llo_original>
// kernel: tpu_custom_call.1
$region0: #{tpu_custom_call.1}
  #allocation0 [shape = 'u32[]', space=smem, size = 0x4, offset = 0x4, fixed_abs, tag = 'smem constant byte address 0x4 - core index']
  #allocation1 [shape = 'u32[144,128]{1,0:T(1,128)}', space=vmem, size = 0x12000, scoped, tag = 'internal scratch']
  %s0 = inlined_call_operand.hbm [shape: f32[2,2,128], index: 0, kind: input, shape index: {}]
  %s1 = inlined_call_operand.hbm [shape: f32[1,2,128], index: 1, kind: input, shape index: {}]
  %s2 = inlined_call_operand.hbm [shape: f32[2,2,128], index: 2, kind: output, shape index: {}]
  %s3 = sld [smem:[#allocation0]]
  $region26: #{tpu_custom_call.1} parent=0
    _
  %s5 = ssub.s32 1, %s3
  %s6 = scalar_select 0, %s5, %s3
  $region1: #{tpu_custom_call.1} parent=0
    #allocation2 [shape = 'u8[2048]{0}', space=vmem, size = 0x800, scoped, tag = 'input window, operand 0, single buffered']
    #allocation3 [shape = 's32[1]{0}', space=sflag, size = 0x4, scoped, tag = 'scoped memory for tpu_custom_call.1']
    #allocation4 [shape = 's32[1]{0}', space=sflag, size = 0x4, scoped, tag = 'scoped memory for tpu_custom_call.1']
    #allocation5 [shape = 'u8[1024]{0}', space=vmem, size = 0x400, scoped, tag = 'input window, operand 1, single buffered']
    #allocation6 [shape = 's32[1]{0}', space=sflag, size = 0x4, scoped, tag = 'scoped memory for tpu_custom_call.1']
    #allocation7 [shape = 'u8[2048]{0}', space=vmem, size = 0x800, scoped, tag = 'output window, operand 0, single buffered']
    %7 = vsyncpa [#allocation3], 0
    %8 = vsyncpa [#allocation6], 0
    %9 = vsyncpa [#allocation4], 0
    // Predicated region
    $region2: #{tpu_custom_call.1} parent=1 // pred_check
      _
    $region3: #{tpu_custom_call.1} parent=1 // pred_check_branch
      %11 = sbr.rel (0) target = $region5
    $region4: #{tpu_custom_call.1} parent=1 // pred_region
      %s13 = ssub.s32 64, 64
      %14 = vsyncadd [#allocation3], %s13
      %s15 = sshll.u32 [#allocation2], 4
      %s16 = int_to_ptr.vmem [resolvable:$true] %s15
      %21 = dma.hbm_to_vmem [thread:$0]  %s0, 64, %s16, [#allocation3], 32, 32, 2
    $region5: #{tpu_custom_call.1} parent=1 // pred_fallthru
      _
    // Predicated region
    $region6: #{tpu_custom_call.1} parent=1 // pred_check
      _
    $region7: #{tpu_custom_call.1} parent=1 // pred_check_branch
      %23 = sbr.rel (0) target = $region9
    $region8: #{tpu_custom_call.1} parent=1 // pred_region
      %s25 = ssub.s32 32, 32
      %26 = vsyncadd [#allocation6], %s25
      %s28 = sshll.u32 [#allocation5], 4
      %s29 = int_to_ptr.vmem [resolvable:$true] %s28
      %31 = dma.hbm_to_vmem [thread:$0]  %s1, 32, %s29, [#allocation6]
    $region9: #{tpu_custom_call.1} parent=1 // pred_fallthru
      _
    // Predicated region
    $region10: #{tpu_custom_call.1} parent=1 // pred_check
      _
    $region11: #{tpu_custom_call.1} parent=1 // pred_check_branch
      %33 = sbr.rel (0) target = $region13
    $region12: #{tpu_custom_call.1} parent=1 // pred_region
      %34 = dma.done [#allocation3], 64
    $region13: #{tpu_custom_call.1} parent=1 // pred_fallthru
      _
    // Predicated region
    $region14: #{tpu_custom_call.1} parent=1 // pred_check
      _
    $region15: #{tpu_custom_call.1} parent=1 // pred_check_branch
      %36 = sbr.rel (0) target = $region17
    $region16: #{tpu_custom_call.1} parent=1 // pred_region
      %37 = dma.done [#allocation6], 32
    $region17: #{tpu_custom_call.1} parent=1 // pred_fallthru
      _
    %v38 = vld [vmem:[#allocation2] sm:$0x3]
    %v39 = vld [vmem:[#allocation2 + $0x2] sm:$0x3]
    %v40 = vld [vmem:[#allocation5] sm:$0x3]
    %v41 = vadd.f32 %v38, %v40
    %v42 = vadd.f32 %v39, %v40
    %43 = vst [vmem:[#allocation7] sm:$0x3] %v41
    %44 = vst [vmem:[#allocation7 + $0x2] sm:$0x3] %v42
    // Predicated region
    $region18: #{tpu_custom_call.1} parent=1 // pred_check
      _
    $region19: #{tpu_custom_call.1} parent=1 // pred_check_branch
      %46 = sbr.rel (0) target = $region21
    $region20: #{tpu_custom_call.1} parent=1 // pred_region
      %s48 = ssub.s32 64, 64
      %49 = vsyncadd [#allocation4], %s48
      %s50 = sshll.u32 [#allocation7], 4
      %s51 = int_to_ptr.vmem [resolvable:$true] %s50
      %56 = dma.vmem_to_hbm [thread:$0]  %s51, 64, %s2, [#allocation4], 32, 32, 2
    $region21: #{tpu_custom_call.1} parent=1 // pred_fallthru
      _
    // Predicated region
    $region22: #{tpu_custom_call.1} parent=1 // pred_check
      _
    $region23: #{tpu_custom_call.1} parent=1 // pred_check_branch
      %58 = sbr.rel (0) target = $region25
    $region24: #{tpu_custom_call.1} parent=1 // pred_region
      %59 = dma.done [#allocation4], 64
    $region25: #{tpu_custom_call.1} parent=1 // pred_fallthru
      _
    %60 = vsyncpa [#allocation3], 1
    %61 = vsyncpa [#allocation6], 1
    %62 = vsyncpa [#allocation4], 1

</llo_original>
